<compile_context>
chip_gen: v6e
topology: v6e:2x2x1
jax: 0.10.0
libtpu: 0.0.40
codegen_flags: <defaults>
</compile_context>

<pallas_src>
import jax
import jax.numpy as jnp
from jax import lax
from jax.experimental import pallas as pl
from jax.experimental.pallas import tpu as pltpu


def _round_up(x, m):
    return (x + m - 1) // m * m


def _disc_kernel(users_ref, items_ref,      # scalar prefetch (SMEM), (B_pad,)
                 b_ref,                      # (1, 1, block_b) bias tile (VMEM)
                 emb_u_hbm, emb_i_hbm,       # full tables, left in HBM (ANY)
                 o_ref,                      # (1, 1, block_b) output tile
                 u_buf, i_buf,               # (block_b, D) VMEM gather buffers
                 sem):                       # DMA semaphores, shape (2,)
    block_b, _ = u_buf.shape
    base = pl.program_id(0) * block_b

    # Issue all row-gather DMAs for this tile; they overlap each other.
    def issue(r, carry):
        u_idx = users_ref[base + r]
        i_idx = items_ref[base + r]
        pltpu.make_async_copy(emb_u_hbm.at[pl.ds(u_idx, 1), :],
                              u_buf.at[pl.ds(r, 1), :], sem.at[0]).start()
        pltpu.make_async_copy(emb_i_hbm.at[pl.ds(i_idx, 1), :],
                              i_buf.at[pl.ds(r, 1), :], sem.at[1]).start()
        return carry

    lax.fori_loop(0, block_b, issue, 0)

    # Drain: every copy signalled a shared semaphore; wait once per copy
    # (same (1, D) shape -> exact semaphore accounting).
    def drain(r, carry):
        pltpu.make_async_copy(emb_u_hbm.at[pl.ds(0, 1), :],
                              u_buf.at[pl.ds(0, 1), :], sem.at[0]).wait()
        pltpu.make_async_copy(emb_i_hbm.at[pl.ds(0, 1), :],
                              i_buf.at[pl.ds(0, 1), :], sem.at[1]).wait()
        return carry

    lax.fori_loop(0, block_b, drain, 0)

    u = u_buf[...].astype(jnp.float32)
    it = i_buf[...].astype(jnp.float32)
    s = jnp.sum(u * it, axis=1) + b_ref[0, 0, :]            # (block_b,)
    o_ref[0, 0, :] = jax.nn.sigmoid(s).astype(o_ref.dtype)  # lane-dense store


def discriminator_forward(users, items, emb_users, emb_items, bias_items,
                          *, block_b=None):
    """Pallas implementation of Discriminator.forward.

    Args:
      users: (B,) int32 user indices.
      items: (B,) int32 item indices.
      emb_users: (num_users, D) float32 user embedding table.
      emb_items: (num_items, D) float32 item embedding table.
      bias_items: (num_items, 1) float32 item bias table.

    Returns:
      (B,) float32 scores in (0, 1).
    """
    users = jnp.asarray(users, jnp.int32)
    items = jnp.asarray(items, jnp.int32)
    B = users.shape[0]
    D = emb_users.shape[1]

    # Tile size: multiple of 128 lanes; cap the two (block_b, D) f32 gather
    # buffers to ~4 MiB total so tiles also fit v7x's smaller VMEM.
    if block_b is None:
        block_b = 512
    max_rows = max(128, ((4 * 1024 * 1024) // (2 * D * 4)) // 128 * 128)
    block_b = min(_round_up(block_b, 128), max_rows, _round_up(B, 128))
    B_pad = _round_up(B, block_b)
    num_tiles = B_pad // block_b

    pad = B_pad - B
    users_p = jnp.pad(users, (0, pad))   # padded with 0 (a valid row)
    items_p = jnp.pad(items, (0, pad))

    # Item-bias gather is tiny (4 B per row) -> do it in JAX, laid out
    # lane-dense so the kernel input block is a full-lane row.
    bias = jnp.take(bias_items[:, 0], items_p, axis=0).astype(jnp.float32)
    bias = bias.reshape(num_tiles, 1, block_b)

    gather_bytes = 2 * block_b * D * 4
    vmem_limit = int(min(64 * 1024 * 1024,
                         max(8 * 1024 * 1024, 4 * gather_bytes)))

    out = pl.pallas_call(
        _disc_kernel,
        out_shape=jax.ShapeDtypeStruct((num_tiles, 1, block_b), jnp.float32),
        grid_spec=pltpu.PrefetchScalarGridSpec(
            num_scalar_prefetch=2,
            grid=(num_tiles,),
            in_specs=[
                pl.BlockSpec((1, 1, block_b),
                             lambda t, u_sref, i_sref: (t, 0, 0)),  # bias
                pl.BlockSpec(memory_space=pl.ANY),   # emb_users stays in HBM
                pl.BlockSpec(memory_space=pl.ANY),   # emb_items stays in HBM
            ],
            out_specs=pl.BlockSpec((1, 1, block_b),
                                   lambda t, u_sref, i_sref: (t, 0, 0)),
            scratch_shapes=[
                pltpu.VMEM((block_b, D), emb_users.dtype),
                pltpu.VMEM((block_b, D), emb_items.dtype),
                pltpu.SemaphoreType.DMA((2,)),
            ]),
        compiler_params=pltpu.CompilerParams(
            dimension_semantics=("parallel",),
            vmem_limit_bytes=vmem_limit),
    )(users_p, items_p, bias, emb_users, emb_items)

    return out.reshape(B_pad)[:B]


def init_discriminator_params(key, num_users, num_items, emb_dim):
    """Matches nn.init.uniform_(-0.05, 0.05) for embeddings, zeros for bias."""
    # TODO(synk): store the embedding tables in bfloat16 to halve HBM gather
    # traffic once packed (bf16) single-row dynamic DMA destinations are
    # validated; the kernel already upcasts to f32 before the multiply.
    k_u, k_i = jax.random.split(key)
    emb_users = jax.random.uniform(k_u, (num_users, emb_dim),
                                   minval=-0.05, maxval=0.05,
                                   dtype=jnp.float32)
    emb_items = jax.random.uniform(k_i, (num_items, emb_dim),
                                   minval=-0.05, maxval=0.05,
                                   dtype=jnp.float32)
    bias_items = jnp.zeros((num_items, 1), dtype=jnp.float32)
    return emb_users, emb_items, bias_items


def _reference_forward(users, items, emb_users, emb_items, bias_items):
    u = emb_users[users]
    it = emb_items[items]
    b = bias_items[items][:, 0]
    return jax.nn.sigmoid(jnp.sum(u * it, axis=1) + b)


if __name__ == "__main__":
    num_users, num_items, emb_dim = 32, 64, 32
    batch = 8

    key = jax.random.PRNGKey(0)
    k_params, k_users, k_items = jax.random.split(key, 3)

    emb_users, emb_items, bias_items = init_discriminator_params(
        k_params, num_users, num_items, emb_dim)

    users = jax.random.randint(k_users, (batch,), 0, num_users, dtype=jnp.int32)
    items = jax.random.randint(k_items, (batch,), 0, num_items, dtype=jnp.int32)

    scores = discriminator_forward(users, items, emb_users, emb_items,
                                   bias_items)
    scores = jax.block_until_ready(scores)

    ref = _reference_forward(users, items, emb_users, emb_items, bias_items)
    assert scores.shape == (batch,)
    assert jnp.allclose(scores, ref, atol=1e-5, rtol=1e-5)

    print("KERNEL_OK")
</pallas_src>

<mosaic_0001>
module attributes {stable_mosaic.version = 11 : i64} {
  func.func @_disc_kernel(%arg0: i32, %arg1: memref<128xi32, #tpu.memory_space<smem>>, %arg2: memref<128xi32, #tpu.memory_space<smem>>, %arg3: memref<1x1x128xf32, #tpu.memory_space<vmem>>, %arg4: memref<32x32xf32, #tpu.memory_space<any>>, %arg5: memref<64x32xf32, #tpu.memory_space<any>>, %arg6: memref<1x1x128xf32, #tpu.memory_space<vmem>>, %arg7: memref<128x32xf32, #tpu.memory_space<vmem>>, %arg8: memref<128x32xf32, #tpu.memory_space<vmem>>, %arg9: memref<2x!tpu.dma_semaphore, #tpu.memory_space<semaphore_mem>>) attributes {dimension_semantics = [#tpu.dimension_semantics<parallel>], iteration_bounds = array<i64: 1>, scalar_prefetch = 2 : i64, scratch_operands = 3 : i64, tpu.core_type = #tpu.core_type<tc>, window_params = [{transform_indices = @transform_0, window_bounds = array<i64: 1, 1, 128>}, {}, {}, {transform_indices = @transform_3, window_bounds = array<i64: 1, 1, 128>}]} {
    %c128_i32 = arith.constant 128 : i32
    %0 = arith.muli %arg0, %c128_i32 : i32
    %c0_i32 = arith.constant 0 : i32
    %c128_i32_0 = arith.constant 128 : i32
    %1 = arith.addi %c0_i32, %c128_i32_0 : i32
    %c1_i32 = arith.constant 1 : i32
    scf.for %arg10 = %c0_i32 to %1 step %c1_i32  : i32 {
      %18 = arith.addi %0, %arg10 : i32
      %19 = arith.index_cast %18 : i32 to index
      %20 = memref.load %arg1[%19] : memref<128xi32, #tpu.memory_space<smem>>
      %21 = arith.addi %0, %arg10 : i32
      %22 = arith.index_cast %21 : i32 to index
      %23 = memref.load %arg2[%22] : memref<128xi32, #tpu.memory_space<smem>>
      %c0_i32_15 = arith.constant 0 : i32
      %c0_i32_16 = arith.constant 0 : i32
      %24 = tpu.memref_slice %arg4[%20, %c0_i32_16] : memref<32x32xf32, #tpu.memory_space<any>> -> memref<1x32xf32, #tpu.memory_space<any>>
      %c0_i32_17 = arith.constant 0 : i32
      %25 = tpu.memref_slice %arg7[%arg10, %c0_i32_17] : memref<128x32xf32, #tpu.memory_space<vmem>> -> memref<1x32xf32, #tpu.memory_space<vmem>>
      %26 = tpu.memref_slice %arg9[%c0_i32_15] : memref<2x!tpu.dma_semaphore, #tpu.memory_space<semaphore_mem>> -> memref<1x!tpu.dma_semaphore, #tpu.memory_space<semaphore_mem>>
      %27 = tpu.memref_squeeze %26 : memref<1x!tpu.dma_semaphore, #tpu.memory_space<semaphore_mem>> -> memref<!tpu.dma_semaphore, #tpu.memory_space<semaphore_mem>>
      tpu.enqueue_dma source(%24 : memref<1x32xf32, #tpu.memory_space<any>>) target(%25 : memref<1x32xf32, #tpu.memory_space<vmem>>) target_semaphore(%27 : memref<!tpu.dma_semaphore, #tpu.memory_space<semaphore_mem>>)
      %c1_i32_18 = arith.constant 1 : i32
      %c0_i32_19 = arith.constant 0 : i32
      %28 = tpu.memref_slice %arg5[%23, %c0_i32_19] : memref<64x32xf32, #tpu.memory_space<any>> -> memref<1x32xf32, #tpu.memory_space<any>>
      %c0_i32_20 = arith.constant 0 : i32
      %29 = tpu.memref_slice %arg8[%arg10, %c0_i32_20] : memref<128x32xf32, #tpu.memory_space<vmem>> -> memref<1x32xf32, #tpu.memory_space<vmem>>
      %30 = tpu.memref_slice %arg9[%c1_i32_18] : memref<2x!tpu.dma_semaphore, #tpu.memory_space<semaphore_mem>> -> memref<1x!tpu.dma_semaphore, #tpu.memory_space<semaphore_mem>>
      %31 = tpu.memref_squeeze %30 : memref<1x!tpu.dma_semaphore, #tpu.memory_space<semaphore_mem>> -> memref<!tpu.dma_semaphore, #tpu.memory_space<semaphore_mem>>
      tpu.enqueue_dma source(%28 : memref<1x32xf32, #tpu.memory_space<any>>) target(%29 : memref<1x32xf32, #tpu.memory_space<vmem>>) target_semaphore(%31 : memref<!tpu.dma_semaphore, #tpu.memory_space<semaphore_mem>>)
    }
    %c128_i32_1 = arith.constant 128 : i32
    %c0_i32_2 = arith.constant 0 : i32
    %c128_i32_3 = arith.constant 128 : i32
    %2 = arith.addi %c0_i32_2, %c128_i32_3 : i32
    %c1_i32_4 = arith.constant 1 : i32
    scf.for %arg10 = %c0_i32_2 to %2 step %c1_i32_4  : i32 {
      %c0_i32_15 = arith.constant 0 : i32
      %c0_i32_16 = arith.constant 0 : i32
      %c0_i32_17 = arith.constant 0 : i32
      %18 = tpu.memref_slice %arg4[%c0_i32_16, %c0_i32_17] : memref<32x32xf32, #tpu.memory_space<any>> -> memref<1x32xf32, #tpu.memory_space<any>>
      %c0_i32_18 = arith.constant 0 : i32
      %c0_i32_19 = arith.constant 0 : i32
      %19 = tpu.memref_slice %arg7[%c0_i32_18, %c0_i32_19] : memref<128x32xf32, #tpu.memory_space<vmem>> -> memref<1x32xf32, #tpu.memory_space<vmem>>
      %20 = tpu.memref_slice %arg9[%c0_i32_15] : memref<2x!tpu.dma_semaphore, #tpu.memory_space<semaphore_mem>> -> memref<1x!tpu.dma_semaphore, #tpu.memory_space<semaphore_mem>>
      %21 = tpu.memref_squeeze %20 : memref<1x!tpu.dma_semaphore, #tpu.memory_space<semaphore_mem>> -> memref<!tpu.dma_semaphore, #tpu.memory_space<semaphore_mem>>
      tpu.wait_dma2 semaphore(%21 : memref<!tpu.dma_semaphore, #tpu.memory_space<semaphore_mem>>) src(%18 : memref<1x32xf32, #tpu.memory_space<any>>) dst(%19 : memref<1x32xf32, #tpu.memory_space<vmem>>)
      %c1_i32_20 = arith.constant 1 : i32
      %c0_i32_21 = arith.constant 0 : i32
      %c0_i32_22 = arith.constant 0 : i32
      %22 = tpu.memref_slice %arg5[%c0_i32_21, %c0_i32_22] : memref<64x32xf32, #tpu.memory_space<any>> -> memref<1x32xf32, #tpu.memory_space<any>>
      %c0_i32_23 = arith.constant 0 : i32
      %c0_i32_24 = arith.constant 0 : i32
      %23 = tpu.memref_slice %arg8[%c0_i32_23, %c0_i32_24] : memref<128x32xf32, #tpu.memory_space<vmem>> -> memref<1x32xf32, #tpu.memory_space<vmem>>
      %24 = tpu.memref_slice %arg9[%c1_i32_20] : memref<2x!tpu.dma_semaphore, #tpu.memory_space<semaphore_mem>> -> memref<1x!tpu.dma_semaphore, #tpu.memory_space<semaphore_mem>>
      %25 = tpu.memref_squeeze %24 : memref<1x!tpu.dma_semaphore, #tpu.memory_space<semaphore_mem>> -> memref<!tpu.dma_semaphore, #tpu.memory_space<semaphore_mem>>
      tpu.wait_dma2 semaphore(%25 : memref<!tpu.dma_semaphore, #tpu.memory_space<semaphore_mem>>) src(%22 : memref<1x32xf32, #tpu.memory_space<any>>) dst(%23 : memref<1x32xf32, #tpu.memory_space<vmem>>)
    }
    %c0 = arith.constant 0 : index
    %c0_5 = arith.constant 0 : index
    %3 = vector.load %arg7[%c0, %c0_5] : memref<128x32xf32, #tpu.memory_space<vmem>>, vector<128x32xf32>
    %c0_6 = arith.constant 0 : index
    %c0_7 = arith.constant 0 : index
    %4 = vector.load %arg8[%c0_6, %c0_7] : memref<128x32xf32, #tpu.memory_space<vmem>>, vector<128x32xf32>
    %5 = arith.mulf %3, %4 : vector<128x32xf32>
    %cst = arith.constant dense<0.000000e+00> : vector<128xf32>
    %6 = vector.multi_reduction <add>, %5, %cst [1] : vector<128x32xf32> to vector<128xf32>
    %c0_8 = arith.constant 0 : index
    %c0_9 = arith.constant 0 : index
    %c0_10 = arith.constant 0 : index
    %7 = vector.load %arg3[%c0_8, %c0_9, %c0_10] : memref<1x1x128xf32, #tpu.memory_space<vmem>>, vector<1x1x128xf32>
    %8 = vector.shape_cast %7 : vector<1x1x128xf32> to vector<128xf32>
    %9 = arith.addf %6, %8 : vector<128xf32>
    %10 = arith.negf %9 : vector<128xf32>
    %11 = math.exp %10 : vector<128xf32>
    %cst_11 = arith.constant 1.000000e+00 : f32
    %12 = vector.broadcast %cst_11 : f32 to vector<128xf32>
    %13 = arith.addf %12, %11 : vector<128xf32>
    %14 = arith.divf %12, %13 : vector<128xf32>
    %c0_12 = arith.constant 0 : index
    %c0_13 = arith.constant 0 : index
    %c0_14 = arith.constant 0 : index
    %15 = vector.load %arg6[%c0_12, %c0_13, %c0_14] : memref<1x1x128xf32, #tpu.memory_space<vmem>>, vector<1x1x128xf32>
    %16 = vector.shape_cast %15 : vector<1x1x128xf32> to vector<128xf32>
    %17 = vector.shape_cast %14 : vector<128xf32> to vector<1x1x128xf32>
    tpu.vector_store %arg6[%c0_12, %c0_13, %c0_14], %17 {strides = array<i32>} : memref<1x1x128xf32, #tpu.memory_space<vmem>>, vector<1x1x128xf32>,
    return
  }
  func.func @transform_0(%arg0: i32, %arg1: memref<128xi32, #tpu.memory_space<smem>>, %arg2: memref<128xi32, #tpu.memory_space<smem>>) -> (i32, i32, i32) {
    %c0_i32 = arith.constant 0 : i32
    %c0_i32_0 = arith.constant 0 : i32
    %c0_i32_1 = arith.constant 0 : i32
    return %arg0, %c0_i32, %c0_i32_0 : i32, i32, i32
  }
  func.func @transform_3(%arg0: i32, %arg1: memref<128xi32, #tpu.memory_space<smem>>, %arg2: memref<128xi32, #tpu.memory_space<smem>>) -> (i32, i32, i32) {
    %c0_i32 = arith.constant 0 : i32
    %c0_i32_0 = arith.constant 0 : i32
    %c0_i32_1 = arith.constant 0 : i32
    return %arg0, %c0_i32, %c0_i32_0 : i32, i32, i32
  }
}

</mosaic_0001>

<llo_original>
// kernel: tpu_custom_call.1
$region0: #{tpu_custom_call.1}
  #allocation0 [shape = 'u32[]', space=smem, size = 0x4, offset = 0x4, fixed_abs, tag = 'smem constant byte address 0x4 - core index']
  #allocation1 [shape = 'u32[144,128]{1,0:T(1,128)}', space=vmem, size = 0x12000, scoped, tag = 'internal scratch']
  #allocation2 [shape = 'f32[128,32]{1,0:T(8,128)}', space=vmem, size = 0x10000, scoped, tag = 'scratch operand']
  #allocation3 [shape = 'f32[128,32]{1,0:T(8,128)}', space=vmem, size = 0x10000, scoped, tag = 'scratch operand']
  #allocation4 [shape = 's32[2]{0}', space=sflag, size = 0x8, scoped, tag = 'scratch operand']
  #allocation5 [shape = 's32[1]{0}', space=sflag, size = 0x4, scoped, tag = 'scoped memory for tpu_custom_call.1']
  #allocation6 [shape = 'u8[512]{0}', space=smem, size = 0x200, scoped, tag = 'prefetched SMEM operand 0']
  #allocation7 [shape = 'u8[512]{0}', space=smem, size = 0x200, scoped, tag = 'prefetched SMEM operand 1']
  #allocation10 [shape = 's32[]', space=sflag, size = 0x4, offset = 0, fixed_abs, tag = 'sflag constant byte address 0x0 - dummy sync flag']
  #allocation11 [shape = 's32[]', space=sflag, size = 0x4, offset = 0, fixed_abs, tag = 'sflag constant byte address 0x0 - dummy sync flag']
  %s0 = inlined_call_operand.vmem [shape: s32[128], index: 0, kind: input, shape index: {}]
  %s1 = inlined_call_operand.vmem [shape: s32[128], index: 1, kind: input, shape index: {}]
  %s2 = inlined_call_operand.vmem [shape: f32[1,1,128], index: 2, kind: input, shape index: {}]
  %s3 = inlined_call_operand.vmem [shape: f32[32,32], index: 3, kind: input, shape index: {}]
  %s4 = inlined_call_operand.vmem [shape: f32[64,32], index: 4, kind: input, shape index: {}]
  %s5 = inlined_call_operand.hbm [shape: f32[1,1,128], index: 5, kind: output, shape index: {}]
  %s6 = sld [smem:[#allocation0]]
  $region88: #{tpu_custom_call.1} parent=0
    _
  %s8 = ssub.s32 1, %s6
  %s9 = scalar_select 0, %s8, %s6
  %s10 = sshll.u32 %s0, 4
  %s11 = int_to_ptr.vmem [resolvable:$true] %s10
  %13 = dma.vmem_to_smem %s11, 16, [#allocation6], [#allocation5]
  %s14 = sshll.u32 %s1, 4
  %s15 = int_to_ptr.vmem [resolvable:$true] %s14
  %17 = dma.vmem_to_smem %s15, 16, [#allocation7], [#allocation5]
  %18 = dma.done [#allocation5], 32
  %19 = sfence
  $region1: #{tpu_custom_call.1} parent=0
    #allocation8 [shape = 'u8[512]{0}', space=vmem, size = 0x400, scoped, tag = 'output window, operand 0, single buffered']
    #allocation9 [shape = 's32[1]{0}', space=sflag, size = 0x4, scoped, tag = 'scoped memory for tpu_custom_call.1']
    %20 = vsyncpa [#allocation9], 0
    // Predicated region
    $region2: #{tpu_custom_call.1} parent=1 // pred_check
      _
    $region3: #{tpu_custom_call.1} parent=1 // pred_check_branch
      %22 = sbr.rel (0) target = $region5
    $region4: #{tpu_custom_call.1} parent=1 // pred_region
      _
    $region5: #{tpu_custom_call.1} parent=1 // pred_fallthru
      _
    %s23 = smul.u32 0, 128
    loop: start=0, step=1, limit=128
    $region6: #{tpu_custom_call.1} parent=1 // loop_pre_header
      _
    $region7: #{tpu_custom_call.1} parent=1 // loop_header
      %s25 = sphi 0, %s29
      %p26 = scmp.ge.s32.totalorder %s25, 128
    $region8: #{tpu_custom_call.1} parent=1 // loop_header_branch
      %28 = sbr.rel (%p26) target = $region12
    $region9: #{tpu_custom_call.1} parent=1 // loop_body
      %s30 = sadd.s32 %s23, %s25
      %s31 = sld [smem:[#allocation6 + %s30]]
      %s32 = sld [smem:[#allocation7 + %s30]]
      %s33 = scalar_lea.vmem %s3, %s31
      %s34 = scalar_lea.vmem [#allocation2], %s25
      %p36 = scmp.lt.u32.totalorder 1, 8
      %p37 = pneg %p36
      // Predicated region
      $region13: #{tpu_custom_call.1} parent=9 // pred_check
        _
      $region14: #{tpu_custom_call.1} parent=9 // pred_check_branch
        %39 = sbr.rel (%p36) target = $region16
      $region15: #{tpu_custom_call.1} parent=9 // pred_region
        %s55 = sand.u32 1, 7
        %p56 = scmp.eq.s32.totalorder %s55, 0
        %p57 = pneg %p56
        // Predicated region
        $region28: #{tpu_custom_call.1} parent=15 // pred_check
          _
        $region29: #{tpu_custom_call.1} parent=15 // pred_check_branch
          %59 = sbr.rel (%p56) target = $region31
        $region30: #{tpu_custom_call.1} parent=15 // pred_region
          %s60 = sand.u32 1, 7
          %s61 = ssub.s32 1, %s60
          %s62 = scalar_lea.vmem %s33, %s61
          %s63 = ssub.s32 1, %s60
          %s64 = scalar_lea.vmem %s34, %s63 [#allocation2]
          %s65 = sshll.u32 1, %s60
          %s66 = ssub.s32 %s65, 1
          loop: start=0, step=1, limit=1
          $region32: #{tpu_custom_call.1} parent=30 // loop_pre_header
            _
          $region33: #{tpu_custom_call.1} parent=30 // loop_header
            %s68 = sphi 0, %s72
            %p69 = scmp.ge.s32.totalorder %s68, 1
            %s73 = sphi %s62, %s62
            %s74 = sphi %s64, %s64
          $region34: #{tpu_custom_call.1} parent=30 // loop_header_branch
            %71 = sbr.rel (%p69) target = $region38
          $region35: #{tpu_custom_call.1} parent=30 // loop_body
            %v75 = vld [vmem:[%s73] sm:%s66]
            %76 = vst [vmem:[%s74] sm:%s66] %v75
          $region36: #{tpu_custom_call.1} parent=30 // loop_footer
            %s72 = sadd.s32 1, %s68
          $region37: #{tpu_custom_call.1} parent=30 // loop_footer_branch
            %67 = sbr.rel target = $region33
          $region38: #{tpu_custom_call.1} parent=30 // loop_exit
            _
        $region31: #{tpu_custom_call.1} parent=15 // pred_fallthru
          _
      $region16: #{tpu_custom_call.1} parent=9 // pred_fallthru
        _
      // Predicated region
      $region17: #{tpu_custom_call.1} parent=9 // pred_check
        %p40 = pneg %p36
      $region18: #{tpu_custom_call.1} parent=9 // pred_check_branch
        %42 = sbr.rel (%p40) target = $region20
      $region19: #{tpu_custom_call.1} parent=9 // pred_region
        %s43 = sshll.u32 1, 1
        %s44 = ssub.s32 %s43, 1
        loop: start=0, step=1, limit=1
        $region21: #{tpu_custom_call.1} parent=19 // loop_pre_header
          _
        $region22: #{tpu_custom_call.1} parent=19 // loop_header
          %s46 = sphi 0, %s50
          %p47 = scmp.ge.s32.totalorder %s46, 1
          %s51 = sphi %s33, %s33
          %s52 = sphi %s34, %s34
        $region23: #{tpu_custom_call.1} parent=19 // loop_header_branch
          %49 = sbr.rel (%p47) target = $region27
        $region24: #{tpu_custom_call.1} parent=19 // loop_body
          %v53 = vld [vmem:[%s51] sm:%s44]
          %54 = vst [vmem:[%s52] sm:%s44] %v53
        $region25: #{tpu_custom_call.1} parent=19 // loop_footer
          %s50 = sadd.s32 1, %s46
        $region26: #{tpu_custom_call.1} parent=19 // loop_footer_branch
          %45 = sbr.rel target = $region22
        $region27: #{tpu_custom_call.1} parent=19 // loop_exit
          _
      $region20: #{tpu_custom_call.1} parent=9 // pred_fallthru
        _
      // Predicated region
      $region39: #{tpu_custom_call.1} parent=9 // pred_check
        _
      $region40: #{tpu_custom_call.1} parent=9 // pred_check_branch
        %79 = sbr.rel (0) target = $region42
      $region41: #{tpu_custom_call.1} parent=9 // pred_region
        %80 = vsyncadd [#allocation4], 16
      $region42: #{tpu_custom_call.1} parent=9 // pred_fallthru
        _
      %s81 = scalar_lea.vmem %s4, %s32
      %s82 = scalar_lea.vmem [#allocation3], %s25
      %s83 = scalar_lea.sflag [#allocation4], 1
      %p85 = scmp.lt.u32.totalorder 1, 8
      %p86 = pneg %p85
      // Predicated region
      $region43: #{tpu_custom_call.1} parent=9 // pred_check
        _
      $region44: #{tpu_custom_call.1} parent=9 // pred_check_branch
        %88 = sbr.rel (%p85) target = $region46
      $region45: #{tpu_custom_call.1} parent=9 // pred_region
        %s104 = sand.u32 1, 7
        %p105 = scmp.eq.s32.totalorder %s104, 0
        %p106 = pneg %p105
        // Predicated region
        $region58: #{tpu_custom_call.1} parent=45 // pred_check
          _
        $region59: #{tpu_custom_call.1} parent=45 // pred_check_branch
          %108 = sbr.rel (%p105) target = $region61
        $region60: #{tpu_custom_call.1} parent=45 // pred_region
          %s109 = sand.u32 1, 7
          %s110 = ssub.s32 1, %s109
          %s111 = scalar_lea.vmem %s81, %s110
          %s112 = ssub.s32 1, %s109
          %s113 = scalar_lea.vmem %s82, %s112 [#allocation3]
          %s114 = sshll.u32 1, %s109
          %s115 = ssub.s32 %s114, 1
          loop: start=0, step=1, limit=1
          $region62: #{tpu_custom_call.1} parent=60 // loop_pre_header
            _
          $region63: #{tpu_custom_call.1} parent=60 // loop_header
            %s117 = sphi 0, %s121
            %p118 = scmp.ge.s32.totalorder %s117, 1
            %s122 = sphi %s111, %s111
            %s123 = sphi %s113, %s113
          $region64: #{tpu_custom_call.1} parent=60 // loop_header_branch
            %120 = sbr.rel (%p118) target = $region68
          $region65: #{tpu_custom_call.1} parent=60 // loop_body
            %v124 = vld [vmem:[%s122] sm:%s115]
            %125 = vst [vmem:[%s123] sm:%s115] %v124
          $region66: #{tpu_custom_call.1} parent=60 // loop_footer
            %s121 = sadd.s32 1, %s117
          $region67: #{tpu_custom_call.1} parent=60 // loop_footer_branch
            %116 = sbr.rel target = $region63
          $region68: #{tpu_custom_call.1} parent=60 // loop_exit
            _
        $region61: #{tpu_custom_call.1} parent=45 // pred_fallthru
          _
      $region46: #{tpu_custom_call.1} parent=9 // pred_fallthru
        _
      // Predicated region
      $region47: #{tpu_custom_call.1} parent=9 // pred_check
        %p89 = pneg %p85
      $region48: #{tpu_custom_call.1} parent=9 // pred_check_branch
        %91 = sbr.rel (%p89) target = $region50
      $region49: #{tpu_custom_call.1} parent=9 // pred_region
        %s92 = sshll.u32 1, 1
        %s93 = ssub.s32 %s92, 1
        loop: start=0, step=1, limit=1
        $region51: #{tpu_custom_call.1} parent=49 // loop_pre_header
          _
        $region52: #{tpu_custom_call.1} parent=49 // loop_header
          %s95 = sphi 0, %s99
          %p96 = scmp.ge.s32.totalorder %s95, 1
          %s100 = sphi %s81, %s81
          %s101 = sphi %s82, %s82
        $region53: #{tpu_custom_call.1} parent=49 // loop_header_branch
          %98 = sbr.rel (%p96) target = $region57
        $region54: #{tpu_custom_call.1} parent=49 // loop_body
          %v102 = vld [vmem:[%s100] sm:%s93]
          %103 = vst [vmem:[%s101] sm:%s93] %v102
        $region55: #{tpu_custom_call.1} parent=49 // loop_footer
          %s99 = sadd.s32 1, %s95
        $region56: #{tpu_custom_call.1} parent=49 // loop_footer_branch
          %94 = sbr.rel target = $region52
        $region57: #{tpu_custom_call.1} parent=49 // loop_exit
          _
      $region50: #{tpu_custom_call.1} parent=9 // pred_fallthru
        _
      // Predicated region
      $region69: #{tpu_custom_call.1} parent=9 // pred_check
        _
      $region70: #{tpu_custom_call.1} parent=9 // pred_check_branch
        %128 = sbr.rel (0) target = $region72
      $region71: #{tpu_custom_call.1} parent=9 // pred_region
        %129 = vsyncadd %s83, 16
      $region72: #{tpu_custom_call.1} parent=9 // pred_fallthru
        _
    $region10: #{tpu_custom_call.1} parent=1 // loop_footer
      %s29 = sadd.s32 1, %s25
    $region11: #{tpu_custom_call.1} parent=1 // loop_footer_branch
      %24 = sbr.rel target = $region7
    $region12: #{tpu_custom_call.1} parent=1 // loop_exit
      _
    loop: start=0, step=1, limit=128
    $region73: #{tpu_custom_call.1} parent=1 // loop_pre_header
      _
    $region74: #{tpu_custom_call.1} parent=1 // loop_header
      %s131 = sphi 0, %s135
      %p132 = scmp.ge.s32.totalorder %s131, 128
    $region75: #{tpu_custom_call.1} parent=1 // loop_header_branch
      %134 = sbr.rel (%p132) target = $region79
    $region76: #{tpu_custom_call.1} parent=1 // loop_body
      %s136 = smul.u32 1, 1
      %s137 = sshll.u32 %s136, 4
      %138 = dma.done [#allocation4], %s137
      %s139 = scalar_lea.sflag [#allocation4], 1
      %s140 = sshll.u32 %s136, 4
      %141 = dma.done %s139, %s140
    $region77: #{tpu_custom_call.1} parent=1 // loop_footer
      %s135 = sadd.s32 1, %s131
    $region78: #{tpu_custom_call.1} parent=1 // loop_footer_branch
      %130 = sbr.rel target = $region74
    $region79: #{tpu_custom_call.1} parent=1 // loop_exit
      _
    %v142 = vld [vmem:[#allocation2] sm:$0xff]
    %v143 = vld [vmem:[#allocation2 + $0x8] sm:$0xff]
    %v144 = vld [vmem:[#allocation2 + $0x10] sm:$0xff]
    %v145 = vld [vmem:[#allocation2 + $0x18] sm:$0xff]
    %v146 = vld [vmem:[#allocation2 + $0x20] sm:$0xff]
    %v147 = vld [vmem:[#allocation2 + $0x28] sm:$0xff]
    %v148 = vld [vmem:[#allocation2 + $0x30] sm:$0xff]
    %v149 = vld [vmem:[#allocation2 + $0x38] sm:$0xff]
    %v150 = vld [vmem:[#allocation2 + $0x40] sm:$0xff]
    %v151 = vld [vmem:[#allocation2 + $0x48] sm:$0xff]
    %v152 = vld [vmem:[#allocation2 + $0x50] sm:$0xff]
    %v153 = vld [vmem:[#allocation2 + $0x58] sm:$0xff]
    %v154 = vld [vmem:[#allocation2 + $0x60] sm:$0xff]
    %v155 = vld [vmem:[#allocation2 + $0x68] sm:$0xff]
    %v156 = vld [vmem:[#allocation2 + $0x70] sm:$0xff]
    %v157 = vld [vmem:[#allocation2 + $0x78] sm:$0xff]
    %v158 = vld [vmem:[#allocation3] sm:$0xff]
    %v159 = vld [vmem:[#allocation3 + $0x8] sm:$0xff]
    %v160 = vld [vmem:[#allocation3 + $0x10] sm:$0xff]
    %v161 = vld [vmem:[#allocation3 + $0x18] sm:$0xff]
    %v162 = vld [vmem:[#allocation3 + $0x20] sm:$0xff]
    %v163 = vld [vmem:[#allocation3 + $0x28] sm:$0xff]
    %v164 = vld [vmem:[#allocation3 + $0x30] sm:$0xff]
    %v165 = vld [vmem:[#allocation3 + $0x38] sm:$0xff]
    %v166 = vld [vmem:[#allocation3 + $0x40] sm:$0xff]
    %v167 = vld [vmem:[#allocation3 + $0x48] sm:$0xff]
    %v168 = vld [vmem:[#allocation3 + $0x50] sm:$0xff]
    %v169 = vld [vmem:[#allocation3 + $0x58] sm:$0xff]
    %v170 = vld [vmem:[#allocation3 + $0x60] sm:$0xff]
    %v171 = vld [vmem:[#allocation3 + $0x68] sm:$0xff]
    %v172 = vld [vmem:[#allocation3 + $0x70] sm:$0xff]
    %v173 = vld [vmem:[#allocation3 + $0x78] sm:$0xff]
    %v174 = vmul.f32 %v142, %v158
    %v175 = vmul.f32 %v143, %v159
    %v176 = vmul.f32 %v144, %v160
    %v177 = vmul.f32 %v145, %v161
    %v178 = vmul.f32 %v146, %v162
    %v179 = vmul.f32 %v147, %v163
    %v180 = vmul.f32 %v148, %v164
    %v181 = vmul.f32 %v149, %v165
    %v182 = vmul.f32 %v150, %v166
    %v183 = vmul.f32 %v151, %v167
    %v184 = vmul.f32 %v152, %v168
    %v185 = vmul.f32 %v153, %v169
    %v186 = vmul.f32 %v154, %v170
    %v187 = vmul.f32 %v155, %v171
    %v188 = vmul.f32 %v156, %v172
    %v189 = vmul.f32 %v157, %v173
    %vm190 = vcmask 261120
    %v191 = vsel %vm190, %v174, 0.0
    %192 = vadd.xlane.f32.xlu0 %v191
    %v193 = vpop.xlane.xlu0 %192
    %v194 = vsel %vm190, %v175, 0.0
    %195 = vadd.xlane.f32.xlu0 %v194
    %v196 = vpop.xlane.xlu0 %195
    %v197 = vsel %vm190, %v176, 0.0
    %198 = vadd.xlane.f32.xlu0 %v197
    %v199 = vpop.xlane.xlu0 %198
    %v200 = vsel %vm190, %v177, 0.0
    %201 = vadd.xlane.f32.xlu0 %v200
    %v202 = vpop.xlane.xlu0 %201
    %v203 = vsel %vm190, %v178, 0.0
    %204 = vadd.xlane.f32.xlu0 %v203
    %v205 = vpop.xlane.xlu0 %204
    %v206 = vsel %vm190, %v179, 0.0
    %207 = vadd.xlane.f32.xlu0 %v206
    %v208 = vpop.xlane.xlu0 %207
    %v209 = vsel %vm190, %v180, 0.0
    %210 = vadd.xlane.f32.xlu0 %v209
    %v211 = vpop.xlane.xlu0 %210
    %v212 = vsel %vm190, %v181, 0.0
    %213 = vadd.xlane.f32.xlu0 %v212
    %v214 = vpop.xlane.xlu0 %213
    %v215 = vsel %vm190, %v182, 0.0
    %216 = vadd.xlane.f32.xlu0 %v215
    %v217 = vpop.xlane.xlu0 %216
    %v218 = vsel %vm190, %v183, 0.0
    %219 = vadd.xlane.f32.xlu0 %v218
    %v220 = vpop.xlane.xlu0 %219
    %v221 = vsel %vm190, %v184, 0.0
    %222 = vadd.xlane.f32.xlu0 %v221
    %v223 = vpop.xlane.xlu0 %222
    %v224 = vsel %vm190, %v185, 0.0
    %225 = vadd.xlane.f32.xlu0 %v224
    %v226 = vpop.xlane.xlu0 %225
    %v227 = vsel %vm190, %v186, 0.0
    %228 = vadd.xlane.f32.xlu0 %v227
    %v229 = vpop.xlane.xlu0 %228
    %v230 = vsel %vm190, %v187, 0.0
    %231 = vadd.xlane.f32.xlu0 %v230
    %v232 = vpop.xlane.xlu0 %231
    %v233 = vsel %vm190, %v188, 0.0
    %234 = vadd.xlane.f32.xlu0 %v233
    %v235 = vpop.xlane.xlu0 %234
    %v236 = vsel %vm190, %v189, 0.0
    %237 = vadd.xlane.f32.xlu0 %v236
    %v238 = vpop.xlane.xlu0 %237
    %v239 = vld [vmem:[%s2] sm:$0x1]
    %v241 = vlaneseq
    %v242 = vshrl.u32 %v241, 7
    %v243 = vsub.s32 0, %v242
    %v244 = vrot.slane %v239, %v243
    %246 = vbcast.lane.b32.xlu0 %v244, 256
    %v247 = vpop.permute.xlu0 %246
    %s249 = sor.u32 256, 8
    %250 = vbcast.lane.b32.xlu0 %v244, %s249
    %v251 = vpop.permute.xlu0 %250
    %s253 = sor.u32 256, 16
    %254 = vbcast.lane.b32.xlu0 %v244, %s253
    %v255 = vpop.permute.xlu0 %254
    %s257 = sor.u32 256, 24
    %258 = vbcast.lane.b32.xlu0 %v244, %s257
    %v259 = vpop.permute.xlu0 %258
    %s261 = sor.u32 256, 32
    %262 = vbcast.lane.b32.xlu0 %v244, %s261
    %v263 = vpop.permute.xlu0 %262
    %s265 = sor.u32 256, 40
    %266 = vbcast.lane.b32.xlu0 %v244, %s265
    %v267 = vpop.permute.xlu0 %266
    %s269 = sor.u32 256, 48
    %270 = vbcast.lane.b32.xlu0 %v244, %s269
    %v271 = vpop.permute.xlu0 %270
    %s273 = sor.u32 256, 56
    %274 = vbcast.lane.b32.xlu0 %v244, %s273
    %v275 = vpop.permute.xlu0 %274
    %s277 = sor.u32 256, 64
    %278 = vbcast.lane.b32.xlu0 %v244, %s277
    %v279 = vpop.permute.xlu0 %278
    %s281 = sor.u32 256, 72
    %282 = vbcast.lane.b32.xlu0 %v244, %s281
    %v283 = vpop.permute.xlu0 %282
    %s285 = sor.u32 256, 80
    %286 = vbcast.lane.b32.xlu0 %v244, %s285
    %v287 = vpop.permute.xlu0 %286
    %s289 = sor.u32 256, 88
    %290 = vbcast.lane.b32.xlu0 %v244, %s289
    %v291 = vpop.permute.xlu0 %290
    %s293 = sor.u32 256, 96
    %294 = vbcast.lane.b32.xlu0 %v244, %s293
    %v295 = vpop.permute.xlu0 %294
    %s297 = sor.u32 256, 104
    %298 = vbcast.lane.b32.xlu0 %v244, %s297
    %v299 = vpop.permute.xlu0 %298
    %s301 = sor.u32 256, 112
    %302 = vbcast.lane.b32.xlu0 %v244, %s301
    %v303 = vpop.permute.xlu0 %302
    %s305 = sor.u32 256, 120
    %306 = vbcast.lane.b32.xlu0 %v244, %s305
    %v307 = vpop.permute.xlu0 %306
    %v324 = vadd.f32 %v193, %v247
    %v325 = vadd.f32 %v196, %v251
    %v326 = vadd.f32 %v199, %v255
    %v327 = vadd.f32 %v202, %v259
    %v328 = vadd.f32 %v205, %v263
    %v329 = vadd.f32 %v208, %v267
    %v330 = vadd.f32 %v211, %v271
    %v331 = vadd.f32 %v214, %v275
    %v332 = vadd.f32 %v217, %v279
    %v333 = vadd.f32 %v220, %v283
    %v334 = vadd.f32 %v223, %v287
    %v335 = vadd.f32 %v226, %v291
    %v336 = vadd.f32 %v229, %v295
    %v337 = vadd.f32 %v232, %v299
    %v338 = vadd.f32 %v235, %v303
    %v339 = vadd.f32 %v238, %v307
    %v340 = vxor.u32 %v324, 2147483648
    %v341 = vxor.u32 %v325, 2147483648
    %v342 = vxor.u32 %v326, 2147483648
    %v343 = vxor.u32 %v327, 2147483648
    %v344 = vxor.u32 %v328, 2147483648
    %v345 = vxor.u32 %v329, 2147483648
    %v346 = vxor.u32 %v330, 2147483648
    %v347 = vxor.u32 %v331, 2147483648
    %v348 = vxor.u32 %v332, 2147483648
    %v349 = vxor.u32 %v333, 2147483648
    %v350 = vxor.u32 %v334, 2147483648
    %v351 = vxor.u32 %v335, 2147483648
    %v352 = vxor.u32 %v336, 2147483648
    %v353 = vxor.u32 %v337, 2147483648
    %v354 = vxor.u32 %v338, 2147483648
    %v355 = vxor.u32 %v339, 2147483648
    %v356 = vmul.f32 %v340, 1.442695
    %v357 = vpow.pop %v356
    %v358 = vmul.f32 %v341, 1.442695
    %v359 = vpow.pop %v358
    %v360 = vmul.f32 %v342, 1.442695
    %v361 = vpow.pop %v360
    %v362 = vmul.f32 %v343, 1.442695
    %v363 = vpow.pop %v362
    %v364 = vmul.f32 %v344, 1.442695
    %v365 = vpow.pop %v364
    %v366 = vmul.f32 %v345, 1.442695
    %v367 = vpow.pop %v366
    %v368 = vmul.f32 %v346, 1.442695
    %v369 = vpow.pop %v368
    %v370 = vmul.f32 %v347, 1.442695
    %v371 = vpow.pop %v370
    %v372 = vmul.f32 %v348, 1.442695
    %v373 = vpow.pop %v372
    %v374 = vmul.f32 %v349, 1.442695
    %v375 = vpow.pop %v374
    %v376 = vmul.f32 %v350, 1.442695
    %v377 = vpow.pop %v376
    %v378 = vmul.f32 %v351, 1.442695
    %v379 = vpow.pop %v378
    %v380 = vmul.f32 %v352, 1.442695
    %v381 = vpow.pop %v380
    %v382 = vmul.f32 %v353, 1.442695
    %v383 = vpow.pop %v382
    %v384 = vmul.f32 %v354, 1.442695
    %v385 = vpow.pop %v384
    %v386 = vmul.f32 %v355, 1.442695
    %v387 = vpow.pop %v386
    %v388 = vadd.f32 %v357, 1.0
    %v389 = vadd.f32 %v359, 1.0
    %v390 = vadd.f32 %v361, 1.0
    %v391 = vadd.f32 %v363, 1.0
    %v392 = vadd.f32 %v365, 1.0
    %v393 = vadd.f32 %v367, 1.0
    %v394 = vadd.f32 %v369, 1.0
    %v395 = vadd.f32 %v371, 1.0
    %v396 = vadd.f32 %v373, 1.0
    %v397 = vadd.f32 %v375, 1.0
    %v398 = vadd.f32 %v377, 1.0
    %v399 = vadd.f32 %v379, 1.0
    %v400 = vadd.f32 %v381, 1.0
    %v401 = vadd.f32 %v383, 1.0
    %v402 = vadd.f32 %v385, 1.0
    %v403 = vadd.f32 %v387, 1.0
    %v404 = vrcp.pop %v388
    %v405 = vmul.f32 1.0, %v404
    %v406 = vrcp.pop %v389
    %v407 = vmul.f32 1.0, %v406
    %v408 = vrcp.pop %v390
    %v409 = vmul.f32 1.0, %v408
    %v410 = vrcp.pop %v391
    %v411 = vmul.f32 1.0, %v410
    %v412 = vrcp.pop %v392
    %v413 = vmul.f32 1.0, %v412
    %v414 = vrcp.pop %v393
    %v415 = vmul.f32 1.0, %v414
    %v416 = vrcp.pop %v394
    %v417 = vmul.f32 1.0, %v416
    %v418 = vrcp.pop %v395
    %v419 = vmul.f32 1.0, %v418
    %v420 = vrcp.pop %v396
    %v421 = vmul.f32 1.0, %v420
    %v422 = vrcp.pop %v397
    %v423 = vmul.f32 1.0, %v422
    %v424 = vrcp.pop %v398
    %v425 = vmul.f32 1.0, %v424
    %v426 = vrcp.pop %v399
    %v427 = vmul.f32 1.0, %v426
    %v428 = vrcp.pop %v400
    %v429 = vmul.f32 1.0, %v428
    %v430 = vrcp.pop %v401
    %v431 = vmul.f32 1.0, %v430
    %v432 = vrcp.pop %v402
    %v433 = vmul.f32 1.0, %v432
    %v434 = vrcp.pop %v403
    %v435 = vmul.f32 1.0, %v434
    %452 = vset.pattern.permute.xlu0 0
    %453 = vperm.xlu0 %452, %v405
    %v454 = vpop.permute.xlu0 %453
    %455 = vset.pattern.permute.xlu0 0
    %456 = vperm.xlu0 %455, %v407
    %v457 = vpop.permute.xlu0 %456
    %458 = vset.pattern.permute.xlu0 0
    %459 = vperm.xlu0 %458, %v409
    %v460 = vpop.permute.xlu0 %459
    %461 = vset.pattern.permute.xlu0 0
    %462 = vperm.xlu0 %461, %v411
    %v463 = vpop.permute.xlu0 %462
    %464 = vset.pattern.permute.xlu0 0
    %465 = vperm.xlu0 %464, %v413
    %v466 = vpop.permute.xlu0 %465
    %467 = vset.pattern.permute.xlu0 0
    %468 = vperm.xlu0 %467, %v415
    %v469 = vpop.permute.xlu0 %468
    %470 = vset.pattern.permute.xlu0 0
    %471 = vperm.xlu0 %470, %v417
    %v472 = vpop.permute.xlu0 %471
    %473 = vset.pattern.permute.xlu0 0
    %474 = vperm.xlu0 %473, %v419
    %v475 = vpop.permute.xlu0 %474
    %476 = vset.pattern.permute.xlu0 0
    %477 = vperm.xlu0 %476, %v421
    %v478 = vpop.permute.xlu0 %477
    %479 = vset.pattern.permute.xlu0 0
    %480 = vperm.xlu0 %479, %v423
    %v481 = vpop.permute.xlu0 %480
    %482 = vset.pattern.permute.xlu0 0
    %483 = vperm.xlu0 %482, %v425
    %v484 = vpop.permute.xlu0 %483
    %485 = vset.pattern.permute.xlu0 0
    %486 = vperm.xlu0 %485, %v427
    %v487 = vpop.permute.xlu0 %486
    %488 = vset.pattern.permute.xlu0 0
    %489 = vperm.xlu0 %488, %v429
    %v490 = vpop.permute.xlu0 %489
    %491 = vset.pattern.permute.xlu0 0
    %492 = vperm.xlu0 %491, %v431
    %v493 = vpop.permute.xlu0 %492
    %494 = vset.pattern.permute.xlu0 0
    %495 = vperm.xlu0 %494, %v433
    %v496 = vpop.permute.xlu0 %495
    %497 = vset.pattern.permute.xlu0 0
    %498 = vperm.xlu0 %497, %v435
    %v499 = vpop.permute.xlu0 %498
    %v500 = vlaneseq
    %v501 = vand.u32 %v500, 127
    %v502 = vlaneseq
    %v503 = vshrl.u32 %v502, 7
    %v504 = vsub.s32 %v501, %v503
    %v505 = vrot.slane %v454, %v504
    %v506 = vadd.s32 %v501, 4294967288
    %v507 = vlaneseq
    %v508 = vshrl.u32 %v507, 7
    %v509 = vsub.s32 %v506, %v508
    %v510 = vrot.slane %v457, %v509
    %vm511 = vcmask 130112
    %v512 = vsel %vm511, %v510, %v505
    %v513 = vadd.s32 %v501, 4294967280
    %v514 = vlaneseq
    %v515 = vshrl.u32 %v514, 7
    %v516 = vsub.s32 %v513, %v515
    %v517 = vrot.slane %v460, %v516
    %vm518 = vcmask 195712
    %v519 = vsel %vm518, %v517, %v512
    %v520 = vadd.s32 %v501, 4294967272
    %v521 = vlaneseq
    %v522 = vshrl.u32 %v521, 7
    %v523 = vsub.s32 %v520, %v522
    %v524 = vrot.slane %v463, %v523
    %vm525 = vcmask 261312
    %v526 = vsel %vm525, %v524, %v519
    %v527 = vadd.s32 %v501, 4294967264
    %v528 = vlaneseq
    %v529 = vshrl.u32 %v528, 7
    %v530 = vsub.s32 %v527, %v529
    %v531 = vrot.slane %v466, %v530
    %vm532 = vcmask 326912
    %v533 = vsel %vm532, %v531, %v526
    %v534 = vadd.s32 %v501, 4294967256
    %v535 = vlaneseq
    %v536 = vshrl.u32 %v535, 7
    %v537 = vsub.s32 %v534, %v536
    %v538 = vrot.slane %v469, %v537
    %vm539 = vcmask 392512
    %v540 = vsel %vm539, %v538, %v533
    %v541 = vadd.s32 %v501, 4294967248
    %v542 = vlaneseq
    %v543 = vshrl.u32 %v542, 7
    %v544 = vsub.s32 %v541, %v543
    %v545 = vrot.slane %v472, %v544
    %vm546 = vcmask 458112
    %v547 = vsel %vm546, %v545, %v540
    %v548 = vadd.s32 %v501, 4294967240
    %v549 = vlaneseq
    %v550 = vshrl.u32 %v549, 7
    %v551 = vsub.s32 %v548, %v550
    %v552 = vrot.slane %v475, %v551
    %vm553 = vcmask 523712
    %v554 = vsel %vm553, %v552, %v547
    %v555 = vadd.s32 %v501, 4294967232
    %v556 = vlaneseq
    %v557 = vshrl.u32 %v556, 7
    %v558 = vsub.s32 %v555, %v557
    %v559 = vrot.slane %v478, %v558
    %vm560 = vcmask 589312
    %v561 = vsel %vm560, %v559, %v554
    %v562 = vadd.s32 %v501, 4294967224
    %v563 = vlaneseq
    %v564 = vshrl.u32 %v563, 7
    %v565 = vsub.s32 %v562, %v564
    %v566 = vrot.slane %v481, %v565
    %vm567 = vcmask 654912
    %v568 = vsel %vm567, %v566, %v561
    %v569 = vadd.s32 %v501, 4294967216
    %v570 = vlaneseq
    %v571 = vshrl.u32 %v570, 7
    %v572 = vsub.s32 %v569, %v571
    %v573 = vrot.slane %v484, %v572
    %vm574 = vcmask 720512
    %v575 = vsel %vm574, %v573, %v568
    %v576 = vadd.s32 %v501, 4294967208
    %v577 = vlaneseq
    %v578 = vshrl.u32 %v577, 7
    %v579 = vsub.s32 %v576, %v578
    %v580 = vrot.slane %v487, %v579
    %vm581 = vcmask 786112
    %v582 = vsel %vm581, %v580, %v575
    %v583 = vadd.s32 %v501, 4294967200
    %v584 = vlaneseq
    %v585 = vshrl.u32 %v584, 7
    %v586 = vsub.s32 %v583, %v585
    %v587 = vrot.slane %v490, %v586
    %vm588 = vcmask 851712
    %v589 = vsel %vm588, %v587, %v582
    %v590 = vadd.s32 %v501, 4294967192
    %v591 = vlaneseq
    %v592 = vshrl.u32 %v591, 7
    %v593 = vsub.s32 %v590, %v592
    %v594 = vrot.slane %v493, %v593
    %vm595 = vcmask 917312
    %v596 = vsel %vm595, %v594, %v589
    %v597 = vadd.s32 %v501, 4294967184
    %v598 = vlaneseq
    %v599 = vshrl.u32 %v598, 7
    %v600 = vsub.s32 %v597, %v599
    %v601 = vrot.slane %v496, %v600
    %vm602 = vcmask 982912
    %v603 = vsel %vm602, %v601, %v596
    %v604 = vadd.s32 %v501, 4294967176
    %v605 = vlaneseq
    %v606 = vshrl.u32 %v605, 7
    %v607 = vsub.s32 %v604, %v606
    %v608 = vrot.slane %v499, %v607
    %vm609 = vcmask 1048512
    %v610 = vsel %vm609, %v608, %v603
    %612 = vst [vmem:[#allocation8] sm:$0x1] %v610
    // Predicated region
    $region80: #{tpu_custom_call.1} parent=1 // pred_check
      _
    $region81: #{tpu_custom_call.1} parent=1 // pred_check_branch
      %614 = sbr.rel (0) target = $region83
    $region82: #{tpu_custom_call.1} parent=1 // pred_region
      %s616 = ssub.s32 16, 16
      %617 = vsyncadd [#allocation9], %s616
      %s619 = sshll.u32 [#allocation8], 4
      %s620 = int_to_ptr.vmem [resolvable:$true] %s619
      %622 = dma.vmem_to_hbm [thread:$0]  %s620, 16, %s5, [#allocation9]
    $region83: #{tpu_custom_call.1} parent=1 // pred_fallthru
      _
    // Predicated region
    $region84: #{tpu_custom_call.1} parent=1 // pred_check
      _
    $region85: #{tpu_custom_call.1} parent=1 // pred_check_branch
      %624 = sbr.rel (0) target = $region87
    $region86: #{tpu_custom_call.1} parent=1 // pred_region
      %625 = dma.done [#allocation9], 16
    $region87: #{tpu_custom_call.1} parent=1 // pred_fallthru
      _
    %626 = vsyncpa [#allocation9], 1
  %627 = vsyncmov [#allocation4]
  %s628 = vpop.sfrf %627
  %p629 = scmp.eq.s32.totalorder %s628, 0
  %p630 = pneg %p629
  %632 = shalt.err (%p630)
  %s633 = scalar_lea.sflag [#allocation4], 1
  %634 = vsyncmov %s633
  %s635 = vpop.sfrf %634
  %p636 = scmp.eq.s32.totalorder %s635, 0
  %p637 = pneg %p636
  %639 = shalt.err (%p637)

</llo_original>
